<compile_context>
chip_gen: v5e
topology: v5e:2x2
jax: 0.10.0
libtpu: 0.0.40
codegen_flags: <defaults>
</compile_context>

<pallas_src>
import functools
import math

import jax
import jax.numpy as jnp
from jax.experimental import pallas as pl
from jax.experimental.pallas import tpu as pltpu


def _cdiv(a, b):
    return -(-a // b)


def _fold_rows(vals, acc_rows):
    """Fold (tm, w) -> (acc_rows, w) with sublane-strip adds (pure VPU)."""
    tm, w = vals.shape
    if tm == acc_rows:
        return vals
    return jnp.sum(vals.reshape(tm // acc_rows, acc_rows, w), axis=0)


def _kld_kernel(cov_ref, x_ref, out_ref, acc_ref, *, d_latent, groups,
                rows_total, block_rows, blocks_per_split, aligned):
    """One (tm, W) slab per step; accumulate per-pair KLD terms (sans consts)."""
    s = pl.program_id(0)
    i = pl.program_id(1)

    @pl.when(i == 0)
    def _init():
        acc_ref[...] = jnp.zeros_like(acc_ref)

    dl = d_latent
    tm = block_rows
    cov = cov_ref[0]
    x = x_ref[...].astype(jnp.float32)          # (tm, W), W = groups * 2 * D
    w = x.shape[-1]

    # Logical block index (can point past the last real block on the padded
    # tail steps of an uneven megacore split) and the first row it covers.
    row0 = (s * blocks_per_split + i) * tm
    acc_rows = acc_ref.shape[0]

    # NOTE: the iota masks below are recomputed each step on purpose; they are
    # a handful of VPU ops and the kernel is HBM-bound (hoisting to a scratch
    # would trade them for extra VMEM loads).
    if aligned:
        # D % 128 == 0: every per-group mean/std lane slice is 128-aligned, so
        # there are no relayouts and log/divide only run on the real std lanes.
        row_ok = (row0 + jax.lax.broadcasted_iota(jnp.int32, (tm, dl), 0)
                  ) < rows_total
        contrib = jnp.zeros((acc_rows, dl), jnp.float32)
        for grp in range(groups):
            lo = grp * 2 * dl
            mean = x[:, lo:lo + dl]
            raw_std = x[:, lo + dl:lo + 2 * dl]
            std = jnp.where(row_ok, raw_std, 1.0)      # keep log/div NaN-free
            kld = jnp.log(std) + (cov + mean * mean) / (2.0 * std)
            contrib += _fold_rows(jnp.where(row_ok, kld, 0.0), acc_rows)
        acc_ref[...] += contrib
    else:
        # General path: one XLU rotation pairs each mean lane p (p % 2D < D)
        # with its std at lane p + D; operands stay full-width, no relayouts.
        std_rolled = pltpu.roll(x, shift=w - dl, axis=1)   # == jnp.roll(x,-dl)
        lane = jax.lax.broadcasted_iota(jnp.int32, (tm, w), 1)
        row = jax.lax.broadcasted_iota(jnp.int32, (tm, w), 0)
        ok = ((lane % (2 * dl)) < dl) & ((row0 + row) < rows_total)
        std = jnp.where(ok, std_rolled, 1.0)               # keep log/div NaN-free
        kld = jnp.log(std) + (cov + x * x) / (2.0 * std)
        acc_ref[...] += _fold_rows(jnp.where(ok, kld, 0.0), acc_rows)

    @pl.when(i == pl.num_programs(1) - 1)
    def _finalize():
        out_ref[...] = jnp.broadcast_to(jnp.sum(acc_ref[...]), out_ref.shape)


def _choose_lane_groups(m, base, max_lane):
    """# of (mean,std) groups folded into one lane row (W = g * base)."""
    lane_mult = 128 // math.gcd(base, 128)   # smallest g making W a mult of 128
    g_cap = max(1, max_lane // base)
    cands = [g for g in range(1, min(m, g_cap) + 1) if m % g == 0]
    # Prefer 128-aligned W, then >= 8 rows (sublane-dense blocks), then wide W.
    return max(cands, key=lambda g: (g % lane_mult == 0, (m // g) >= 8, g))


def _choose_row_tile(rows, w, itemsize, sublane_mult, target_bytes):
    """Row tile: multiple of the dtype sublane count, <= rows, ~target bytes."""
    if rows <= sublane_mult:
        return rows                          # block covers the full row extent
    cap = max(sublane_mult,
              (target_bytes // (w * itemsize)) // sublane_mult * sublane_mult)
    full = (rows // sublane_mult) * sublane_mult
    return min(cap, full)


def action_direction_gauss_kld(action_directions_dist, cov, *,
                               max_lane=2048,
                               target_block_bytes=8 << 20,
                               vmem_limit_bytes=48 * 1024 * 1024):
    """Pallas implementation of ActionDirectionGaussKLD.forward.

    action_directions_dist: (B, A, 2, D) array; axis 2 holds (mean, std).
    cov: positive python float (diagonal covariance of the base Gaussian).
    Returns a float32 scalar: mean KLD over all B*A*D latent elements.
    """
    assert isinstance(cov, (float, int)) and cov > 0
    dist = action_directions_dist
    assert dist.ndim == 4 and dist.shape[2] == 2, "expected (B, A, 2, D)"
    b, a, _, dim = dist.shape
    m = b * a                                # number of (mean, std) groups
    base = 2 * dim                           # flat period of one group
    itemsize = dist.dtype.itemsize
    sublane_mult = max(8, 32 // itemsize)    # f32: 8, bf16: 16, int8/fp8: 32

    g = _choose_lane_groups(m, base, max_lane)
    w = g * base                             # lane width
    rows = m // g
    x2d = dist.reshape(rows, w)              # contiguous merge, no HBM copy

    tm = _choose_row_tile(rows, w, itemsize, sublane_mult, target_block_bytes)
    nb = _cdiv(rows, tm)                     # row blocks (last may be ragged)
    splits = 2 if nb >= 2 else 1             # v7x megacore partial sums
    k = _cdiv(nb, splits)                    # inner steps per split

    aligned = (dim % 128 == 0)
    acc_rows = 8 if tm % 8 == 0 else tm
    acc_cols = dim if aligned else w

    cov_arr = jnp.asarray([cov], dtype=jnp.float32)
    kernel = functools.partial(
        _kld_kernel, d_latent=dim, groups=g, rows_total=rows,
        block_rows=tm, blocks_per_split=k, aligned=aligned)

    def x_index_map(s, i):
        # Clamp so the padded tail step of an uneven split stays in-bounds;
        # the in-kernel row mask zeroes its (revisited) contribution.
        return (jnp.minimum(s * k + i, nb - 1), 0)

    partials = pl.pallas_call(
        kernel,
        out_shape=jax.ShapeDtypeStruct((splits, 8, 128), jnp.float32),
        grid_spec=pltpu.PrefetchScalarGridSpec(
            num_scalar_prefetch=0,
            grid=(splits, k),
            in_specs=[
                pl.BlockSpec(memory_space=pltpu.MemorySpace.SMEM),   # cov
                pl.BlockSpec((tm, w), x_index_map),                  # data slab
            ],
            out_specs=pl.BlockSpec((1, 8, 128), lambda s, i: (s, 0, 0)),
            scratch_shapes=[pltpu.VMEM((acc_rows, acc_cols), jnp.float32)],
        ),
        compiler_params=pltpu.CompilerParams(
            dimension_semantics=("parallel", "arbitrary"),
            vmem_limit_bytes=vmem_limit_bytes,
        ),
    )(cov_arr, x2d)

    total = jnp.sum(partials[:, 0, 0])
    count = jnp.float32(m * dim)
    # Fold the per-element constant (-log(cov) - 0.5) in once, as scalars.
    return total / count - jnp.log(cov_arr[0]) - jnp.float32(0.5)


def _reference_kld(dist, cov):
    mean = dist[:, :, 0].astype(jnp.float32)
    std = dist[:, :, 1].astype(jnp.float32)
    kld = jnp.log(std / cov) + (cov + mean**2) / (2.0 * std) - 0.5
    return jnp.mean(kld)


if __name__ == "__main__":
    def make_dist(key, b, a, d, dtype):
        k_mean, k_std = jax.random.split(key)
        mean = jax.random.normal(k_mean, (b, a, d), dtype=jnp.float32)
        # std must be strictly positive (fed to log / used as a divisor)
        std = jnp.abs(jax.random.normal(k_std, (b, a, d), dtype=jnp.float32)) + 0.1
        return jnp.stack([mean, std], axis=2).astype(dtype)    # (B, A, 2, D)

    key = jax.random.PRNGKey(0)
    k1, k2, k3 = jax.random.split(key, 3)

    cases = [
        # Primary small demo: f32, roll path, single (8, 128) block.
        (make_dist(k1, 2, 8, 32, jnp.float32), 0.5, {}, 1e-5),
        # D % 128 == 0 -> aligned per-group path, ragged last row block,
        # 2-way megacore split.
        (make_dist(k2, 3, 7, 128, jnp.float32), 2.0, {}, 1e-5),
        # bf16 + roll path + multi-block grid with an uneven megacore split
        # (tiny block target purely to exercise the ragged/clamped steps).
        (make_dist(k3, 4, 42, 64, jnp.bfloat16), 1.0,
         dict(max_lane=256, target_block_bytes=1 << 14), 1e-4),
    ]

    for dist, cov, kwargs, tol in cases:
        out = jax.block_until_ready(
            action_direction_gauss_kld(dist, cov, **kwargs))
        ref = jax.block_until_ready(_reference_kld(dist, cov))
        assert jnp.allclose(out, ref, rtol=tol, atol=tol), (dist.shape, out, ref)

    print("KERNEL_OK")
</pallas_src>

<mosaic_0001>
module attributes {stable_mosaic.version = 11 : i64} {
  func.func @_kld_kernel(%arg0: i32, %arg1: i32, %arg2: memref<1xf32, #tpu.memory_space<smem>>, %arg3: memref<8x128xf32, #tpu.memory_space<vmem>>, %arg4: memref<1x8x128xf32, #tpu.memory_space<vmem>>, %arg5: memref<8x128xf32, #tpu.memory_space<vmem>>) attributes {dimension_semantics = [#tpu.dimension_semantics<parallel>, #tpu.dimension_semantics<arbitrary>], iteration_bounds = array<i64: 1, 1>, scalar_prefetch = 0 : i64, scratch_operands = 1 : i64, tpu.core_type = #tpu.core_type<tc>, window_params = [{transform_indices = @transform_0, window_bounds = array<i64: 1>}, {transform_indices = @transform_1, window_bounds = array<i64: 8, 128>}, {transform_indices = @transform_2, window_bounds = array<i64: 1, 8, 128>}]} {
    %c0_i32 = arith.constant 0 : i32
    %0 = arith.cmpi eq, %arg1, %c0_i32 : i32
    %1 = arith.extui %0 : i1 to i32
    %c0_i32_0 = arith.constant 0 : i32
    %2 = arith.cmpi ne, %1, %c0_i32_0 : i32
    scf.if %2 {
      %cst_17 = arith.constant 0.000000e+00 : f32
      %52 = vector.broadcast %cst_17 : f32 to vector<8x128xf32>
      %c0_18 = arith.constant 0 : index
      %c0_19 = arith.constant 0 : index
      %53 = vector.load %arg5[%c0_18, %c0_19] : memref<8x128xf32, #tpu.memory_space<vmem>>, vector<8x128xf32>
      tpu.vector_store %arg5[%c0_18, %c0_19], %52 {strides = array<i32>} : memref<8x128xf32, #tpu.memory_space<vmem>>, vector<8x128xf32>,
    } else {
    }
    %c0 = arith.constant 0 : index
    %3 = memref.load %arg2[%c0] : memref<1xf32, #tpu.memory_space<smem>>
    %c0_1 = arith.constant 0 : index
    %c0_2 = arith.constant 0 : index
    %4 = vector.load %arg3[%c0_1, %c0_2] : memref<8x128xf32, #tpu.memory_space<vmem>>, vector<8x128xf32>
    %c1_i32 = arith.constant 1 : i32
    %5 = arith.muli %arg0, %c1_i32 : i32
    %6 = arith.addi %5, %arg1 : i32
    %c8_i32 = arith.constant 8 : i32
    %7 = arith.muli %6, %c8_i32 : i32
    %c96_i32 = arith.constant 96 : i32
    %8 = tpu.dynamic_rotate %4 by %c96_i32 dim 1 : vector<8x128xf32>, i32 -> vector<8x128xf32>
    %9 = tpu.iota {dimensions = array<i32: 1>} : vector<8x128xi32>
    %10 = tpu.iota {dimensions = array<i32: 0>} : vector<8x128xi32>
    %c64_i32 = arith.constant 64 : i32
    %c0_i32_3 = arith.constant 0 : i32
    %11 = arith.cmpi eq, %c64_i32, %c0_i32_3 : i32
    %c1_i32_4 = arith.constant 1 : i32
    %12 = arith.select %11, %c1_i32_4, %c64_i32 : i32
    %13 = vector.broadcast %12 : i32 to vector<8x128xi32>
    %14 = arith.remsi %9, %13 : vector<8x128xi32>
    %c0_i32_5 = arith.constant 0 : i32
    %15 = vector.broadcast %c0_i32_5 : i32 to vector<8x128xi32>
    %16 = arith.cmpi ne, %14, %15 : vector<8x128xi32>
    %c0_i32_6 = arith.constant 0 : i32
    %17 = vector.broadcast %c0_i32_6 : i32 to vector<8x128xi32>
    %18 = arith.cmpi slt, %14, %17 : vector<8x128xi32>
    %c0_i32_7 = arith.constant 0 : i32
    %19 = arith.cmpi slt, %12, %c0_i32_7 : i32
    %20 = vector.broadcast %19 : i1 to vector<8x128xi1>
    %21 = vector.broadcast %20 : vector<8x128xi1> to vector<8x128xi1>
    %22 = arith.xori %18, %21 : vector<8x128xi1>
    %23 = arith.andi %22, %16 : vector<8x128xi1>
    %24 = vector.broadcast %12 : i32 to vector<8x128xi32>
    %25 = arith.addi %14, %24 : vector<8x128xi32>
    %26 = arith.select %23, %25, %14 : vector<8x128xi1>, vector<8x128xi32>
    %c32_i32 = arith.constant 32 : i32
    %27 = vector.broadcast %c32_i32 : i32 to vector<8x128xi32>
    %28 = arith.cmpi slt, %26, %27 : vector<8x128xi32>
    %29 = vector.broadcast %7 : i32 to vector<8x128xi32>
    %30 = arith.addi %29, %10 : vector<8x128xi32>
    %c8_i32_8 = arith.constant 8 : i32
    %31 = vector.broadcast %c8_i32_8 : i32 to vector<8x128xi32>
    %32 = arith.cmpi slt, %30, %31 : vector<8x128xi32>
    %33 = arith.andi %28, %32 : vector<8x128xi1>
    %cst = arith.constant 1.000000e+00 : f32
    %34 = vector.broadcast %cst : f32 to vector<8x128xf32>
    %35 = arith.select %33, %8, %34 : vector<8x128xi1>, vector<8x128xf32>
    %36 = math.log %35 : vector<8x128xf32>
    %37 = arith.mulf %4, %4 : vector<8x128xf32>
    %38 = vector.broadcast %3 : f32 to vector<8x128xf32>
    %39 = arith.addf %38, %37 : vector<8x128xf32>
    %cst_9 = arith.constant 2.000000e+00 : f32
    %40 = vector.broadcast %cst_9 : f32 to vector<8x128xf32>
    %41 = arith.mulf %40, %35 : vector<8x128xf32>
    %42 = arith.divf %39, %41 : vector<8x128xf32>
    %43 = arith.addf %36, %42 : vector<8x128xf32>
    %c0_10 = arith.constant 0 : index
    %c0_11 = arith.constant 0 : index
    %44 = vector.load %arg5[%c0_10, %c0_11] : memref<8x128xf32, #tpu.memory_space<vmem>>, vector<8x128xf32>
    %cst_12 = arith.constant 0.000000e+00 : f32
    %45 = vector.broadcast %cst_12 : f32 to vector<8x128xf32>
    %46 = arith.select %33, %43, %45 : vector<8x128xi1>, vector<8x128xf32>
    %47 = arith.addf %44, %46 : vector<8x128xf32>
    %c0_13 = arith.constant 0 : index
    %c0_14 = arith.constant 0 : index
    %48 = vector.load %arg5[%c0_13, %c0_14] : memref<8x128xf32, #tpu.memory_space<vmem>>, vector<8x128xf32>
    tpu.vector_store %arg5[%c0_13, %c0_14], %47 {strides = array<i32>} : memref<8x128xf32, #tpu.memory_space<vmem>>, vector<8x128xf32>,
    %c0_i32_15 = arith.constant 0 : i32
    %49 = arith.cmpi eq, %arg1, %c0_i32_15 : i32
    %50 = arith.extui %49 : i1 to i32
    %c0_i32_16 = arith.constant 0 : i32
    %51 = arith.cmpi ne, %50, %c0_i32_16 : i32
    scf.if %51 {
      %c0_17 = arith.constant 0 : index
      %c0_18 = arith.constant 0 : index
      %52 = vector.load %arg5[%c0_17, %c0_18] : memref<8x128xf32, #tpu.memory_space<vmem>>, vector<8x128xf32>
      %53 = vector.shape_cast %52 : vector<8x128xf32> to vector<1x8x128xf32>
      %cst_19 = arith.constant dense<0.000000e+00> : vector<1xf32>
      %54 = vector.multi_reduction <add>, %53, %cst_19 [1, 2] : vector<1x8x128xf32> to vector<1xf32>
      %55 = vector.shape_cast %54 : vector<1xf32> to vector<1x1x1xf32>
      %56 = vector.extract %55[0, 0, 0] : f32 from vector<1x1x1xf32>
      %57 = vector.broadcast %56 : f32 to vector<1x8x128xf32>
      %c0_20 = arith.constant 0 : index
      %c0_21 = arith.constant 0 : index
      %c0_22 = arith.constant 0 : index
      %58 = vector.load %arg4[%c0_20, %c0_21, %c0_22] : memref<1x8x128xf32, #tpu.memory_space<vmem>>, vector<1x8x128xf32>
      tpu.vector_store %arg4[%c0_20, %c0_21, %c0_22], %57 {strides = array<i32>} : memref<1x8x128xf32, #tpu.memory_space<vmem>>, vector<1x8x128xf32>,
    } else {
    }
    return
  }
  func.func @transform_0(%arg0: i32, %arg1: i32) -> i32 {
    %c0_i32 = arith.constant 0 : i32
    %c0_i32_0 = arith.constant 0 : i32
    return %c0_i32 : i32
  }
  func.func @transform_1(%arg0: i32, %arg1: i32) -> (i32, i32) {
    %c1_i32 = arith.constant 1 : i32
    %0 = arith.muli %arg0, %c1_i32 : i32
    %1 = arith.addi %0, %arg1 : i32
    %c0_i32 = arith.constant 0 : i32
    %2 = arith.minsi %1, %c0_i32 : i32
    %c0_i32_0 = arith.constant 0 : i32
    %c0_i32_1 = arith.constant 0 : i32
    return %2, %c0_i32_0 : i32, i32
  }
  func.func @transform_2(%arg0: i32, %arg1: i32) -> (i32, i32, i32) {
    %c0_i32 = arith.constant 0 : i32
    %c0_i32_0 = arith.constant 0 : i32
    %c0_i32_1 = arith.constant 0 : i32
    return %arg0, %c0_i32, %c0_i32_0 : i32, i32, i32
  }
}

</mosaic_0001>

<llo_original>
// kernel: tpu_custom_call.1
$region0: #{tpu_custom_call.1}
  #allocation0 [shape = 'u32[]', space=smem, size = 0x4, offset = 0x4, fixed_abs, tag = 'smem constant byte address 0x4 - core index']
  #allocation1 [shape = 'u32[72,128]{1,0:T(1,128)}', space=vmem, size = 0x9000, scoped, tag = 'internal scratch']
  #allocation2 [shape = 'f32[8,128]{1,0:T(8,128)}', space=vmem, size = 0x1000, scoped, tag = 'scratch operand']
  #allocation3 [shape = 'f32[1]{0:T(128)S(6)}', space=smem, size = 0x200, scoped, tag = 'scoped memory for tpu_custom_call.1']
  %s0 = inlined_call_operand.<no memory space> [shape: f32[1], index: 0, kind: input, shape index: {}]
  %s1 = inlined_call_operand.hbm [shape: f32[8,128], index: 1, kind: input, shape index: {}]
  %s2 = inlined_call_operand.hbm [shape: f32[1,8,128], index: 2, kind: output, shape index: {}]
  %s3 = sld [smem:[#allocation0]]
  $region30: #{tpu_custom_call.1} parent=0
    _
  %s5 = ssub.s32 1, %s3
  %s6 = scalar_select 0, %s5, %s3
  %7 = sst [smem:[#allocation3]] %s0
  $region1: #{tpu_custom_call.1} parent=0
    #allocation4 [shape = 'u8[4096]{0}', space=vmem, size = 0x1000, scoped, tag = 'input window, operand 1, single buffered']
    #allocation5 [shape = 's32[1]{0}', space=sflag, size = 0x4, scoped, tag = 'scoped memory for tpu_custom_call.1']
    #allocation6 [shape = 's32[1]{0}', space=sflag, size = 0x4, scoped, tag = 'scoped memory for tpu_custom_call.1']
    #allocation7 [shape = 'u8[4096]{0}', space=vmem, size = 0x1000, scoped, tag = 'output window, operand 0, single buffered']
    %8 = vsyncpa [#allocation5], 0
    %9 = vsyncpa [#allocation6], 0
    // Predicated region
    $region2: #{tpu_custom_call.1} parent=1 // pred_check
      _
    $region3: #{tpu_custom_call.1} parent=1 // pred_check_branch
      %11 = sbr.rel (0) target = $region5
    $region4: #{tpu_custom_call.1} parent=1 // pred_region
      _
    $region5: #{tpu_custom_call.1} parent=1 // pred_fallthru
      _
    // Predicated region
    $region6: #{tpu_custom_call.1} parent=1 // pred_check
      _
    $region7: #{tpu_custom_call.1} parent=1 // pred_check_branch
      %13 = sbr.rel (0) target = $region9
    $region8: #{tpu_custom_call.1} parent=1 // pred_region
      %s14 = sadd.s32 0, 0
      %p15 = scmp.lt.s32.totalorder %s14, 0
      %s16 = scalar_select %p15, %s14, 0
      %18 = vsyncadd [#allocation5], 0
      %s19 = smul.addr %s16, 8
      %s20 = scalar_lea.hbm %s1, %s19
      %s22 = sshll.u32 %s20, 4
      %s23 = int_to_ptr.hbm [resolvable:$true] %s22
      %s24 = sshll.u32 [#allocation4], 4
      %s25 = int_to_ptr.vmem [resolvable:$true] %s24
      %27 = dma.hbm_to_vmem [thread:$0]  %s23, 128, %s25, [#allocation5]
    $region9: #{tpu_custom_call.1} parent=1 // pred_fallthru
      _
    // Predicated region
    $region10: #{tpu_custom_call.1} parent=1 // pred_check
      _
    $region11: #{tpu_custom_call.1} parent=1 // pred_check_branch
      %29 = sbr.rel (0) target = $region13
    $region12: #{tpu_custom_call.1} parent=1 // pred_region
      %31 = dma.done [#allocation5], 128
    $region13: #{tpu_custom_call.1} parent=1 // pred_fallthru
      _
    %s32 = sadd.s32 0, 0
    %p33 = scmp.lt.s32.totalorder %s32, 0
    %s34 = scalar_select %p33, %s32, 0
    %p35 = scmp.eq.s32.totalorder 0, 0
    // Predicated region
    $region14: #{tpu_custom_call.1} parent=1 // pred_check
      %p36 = pneg %p35
    $region15: #{tpu_custom_call.1} parent=1 // pred_check_branch
      %38 = sbr.rel (%p36) target = $region17
    $region16: #{tpu_custom_call.1} parent=1 // pred_region
      %39 = vst [vmem:[#allocation2] sm:$0xff] 0.0
    $region17: #{tpu_custom_call.1} parent=1 // pred_fallthru
      _
    %s40 = sld [smem:[#allocation3]]
    %v41 = vld [vmem:[#allocation4] sm:$0xff]
    %s42 = sadd.s32 0, 0
    %s43 = smul.u32 %s42, 8
    %44 = vrot.lane.b32.xlu0 %v41, 96
    %v45 = vpop.permute.xlu0 %44
    %v46 = vlaneseq
    %v47 = vand.u32 %v46, 127
    %v48 = vlaneseq
    %v49 = vshrl.u32 %v48, 7
    %vm50 = vcmp.lt.s32.totalorder %v47, 0
    %v51 = vsub.s32 0, %v47
    %v52 = vsel %vm50, %v51, %v47
    %v53 = vshrl.u32 %v52, 6
    %v54 = vand.u32 %v52, 63
    %v55 = vsub.s32 0, %v54
    %v56 = vsel %vm50, %v55, %v54
    %vm57 = vcmp.ne.s32.totalorder %v56, 0
    %vm58 = vcmp.lt.s32.totalorder %v56, 0
    %vm59 = vmand %vm58, %vm57
    %v60 = vadd.s32 %v56, 64
    %v61 = vsel %vm59, %v60, %v56
    %vm62 = vcmp.lt.s32.totalorder %v61, 32
    %v63 = vstv %s43
    %v64 = vadd.s32 %v63, %v49
    %vm65 = vcmp.lt.s32.totalorder %v64, 8
    %vm66 = vmand %vm62, %vm65
    %v67 = vsel %vm66, %v45, 1.0
    %v68 = vlog2.pop %v67
    %v69 = vmul.f32 %v68, 0.6931472
    %v70 = vmul.f32 %v41, %v41
    %v71 = vstv %s40
    %v72 = vadd.f32 %v71, %v70
    %v73 = vmul.f32 %v67, 2.0
    %v74 = vrcp.pop %v73
    %v75 = vmul.f32 %v73, %v74
    %v76 = vsub.f32 1.0, %v75
    %v77 = vmul.f32 %v74, %v76
    %v78 = vadd.f32 %v74, %v77
    %vm79 = vweird.f32 %v73
    %vm80 = vweird.f32 %v74
    %vm81 = vmor %vm79, %vm80
    %v82 = vsel %vm81, %v74, %v78
    %v83 = vand.u32 2147483647, %v73
    %vm84 = vcmp.eq.f32.partialorder %v83, 8.507059e+37
    %v85 = vand.u32 %v73, 2147483648
    %v86 = vor.u32 1.1754944e-38, %v85
    %v87 = vsel %vm84, %v86, %v82
    %v88 = vmul.f32 %v72, %v87
    %v89 = vadd.f32 %v69, %v88
    %v90 = vld [vmem:[#allocation2] sm:$0xff]
    %v91 = vsel %vm66, %v89, 0.0
    %v92 = vadd.f32 %v90, %v91
    %93 = vst [vmem:[#allocation2] sm:$0xff] %v92
    // Predicated region
    $region18: #{tpu_custom_call.1} parent=1 // pred_check
      %p94 = pneg %p35
    $region19: #{tpu_custom_call.1} parent=1 // pred_check_branch
      %96 = sbr.rel (%p94) target = $region21
    $region20: #{tpu_custom_call.1} parent=1 // pred_region
      %v97 = vld [vmem:[#allocation2] sm:$0xff]
      %98 = vadd.xlane.f32.xlu0 %v97
      %v99 = vpop.xlane.xlu0 %98
      %v100 = vrot.slane %v99, 4
      %v101 = vadd.f32 %v99, %v100
      %v102 = vrot.slane %v101, 2
      %v103 = vadd.f32 %v101, %v102
      %v104 = vrot.slane %v103, 1
      %v105 = vadd.f32 %v103, %v104
      %s106 = vtos %v105
      %v107 = vstv %s106
      %108 = vst [vmem:[#allocation7] sm:$0xff] %v107
    $region21: #{tpu_custom_call.1} parent=1 // pred_fallthru
      _
    // Predicated region
    $region22: #{tpu_custom_call.1} parent=1 // pred_check
      _
    $region23: #{tpu_custom_call.1} parent=1 // pred_check_branch
      %110 = sbr.rel (0) target = $region25
    $region24: #{tpu_custom_call.1} parent=1 // pred_region
      %112 = vsyncadd [#allocation6], 0
      %s114 = sshll.u32 [#allocation7], 4
      %s115 = int_to_ptr.vmem [resolvable:$true] %s114
      %s116 = sshll.u32 %s2, 4
      %s117 = int_to_ptr.hbm [resolvable:$true] %s116
      %119 = dma.vmem_to_hbm [thread:$0]  %s115, 128, %s117, [#allocation6]
    $region25: #{tpu_custom_call.1} parent=1 // pred_fallthru
      _
    // Predicated region
    $region26: #{tpu_custom_call.1} parent=1 // pred_check
      _
    $region27: #{tpu_custom_call.1} parent=1 // pred_check_branch
      %121 = sbr.rel (0) target = $region29
    $region28: #{tpu_custom_call.1} parent=1 // pred_region
      %123 = dma.done [#allocation6], 128
    $region29: #{tpu_custom_call.1} parent=1 // pred_fallthru
      _
    %124 = vsyncpa [#allocation5], 1
    %125 = vsyncpa [#allocation6], 1

</llo_original>
